<compile_context>
chip_gen: v6e
topology: v6e:2x2x1
jax: 0.10.0
libtpu: 0.0.40
codegen_flags: <defaults>
</compile_context>

<pallas_src>
import functools
import math

import jax
import jax.numpy as jnp
from jax.experimental import pallas as pl
from jax.experimental.pallas import tpu as pltpu

INPUT_DIM = 4
HIDDEN1 = 128
HIDDEN2 = 64
OUTPUT_DIM = 3

# Max batch tile: multiple of 256 (v6e/v7x MXU M-fill) and 128 (v5e MXU), big
# enough to amortize the ~0.35us per-grid-step overhead. Working set per step
# at TB=2048 (lane-padded bf16 x tile ~0.5MiB, f32 out tile ~1MiB, h1/h2 f32
# intermediates ~1.5MiB, x2 double buffering, ~45KB weights) stays far below
# VMEM on every generation (v7x 64MiB included).
_TB_MAX = 2048


def _round_up(v: int, m: int) -> int:
    return -(-v // m) * m


@functools.lru_cache(maxsize=None)
def _num_tensorcores() -> int:
    """2 on v7x (dual TensorCore per chip), else 1."""
    try:
        kind = jax.devices()[0].device_kind.lower()
        if "v7" in kind:
            return 2
    except Exception:
        pass
    return 1


def _choose_tb(batch: int, num_cores: int) -> int:
    """Pick the batch tile.

    v5e/v6e (single TC): grid is a sequential loop, so take the biggest tile
    that fits -- every extra grid step is pure ~0.35us overhead.
    v7x (2 TCs): guarantee >= num_cores evenly sized grid steps so
    dimension_semantics=("parallel",) can shard across TensorCores.
    Always a multiple of 8 sublanes.
    """
    if num_cores >= 2:
        steps = max(num_cores, pl.cdiv(batch, _TB_MAX))
        steps = _round_up(steps, num_cores)
        return min(_TB_MAX, max(8, _round_up(pl.cdiv(batch, steps), 8)))
    if batch <= _TB_MAX:
        return max(8, _round_up(batch, 8))
    return _TB_MAX


def _mlp_kernel(x_ref, w1_ref, b1_ref, w2_ref, b2_ref, w3_ref, b3_ref, o_ref):
    # NOTE: partial tail blocks feed *undefined* rows through this body and
    # mask them on store. That is only correct because every op below is
    # row-local -- do NOT add cross-row ops (batch reductions, normalization,
    # max over the tile) without handling the tail explicitly.

    # ---- Layer 1 (K = INPUT_DIM = 4): VPU broadcast FMAs instead of a
    # nearly-empty MXU pass. Promote to f32 (v5e VPU has no bf16).
    x = x_ref[...].astype(jnp.float32)          # (tb, 4)
    w1 = w1_ref[...].astype(jnp.float32)        # (4, 128)
    acc1 = x[:, 0:1] * w1[0:1, :]
    for k in range(1, INPUT_DIM):               # static unroll
        acc1 = acc1 + x[:, k : k + 1] * w1[k : k + 1, :]
    h1 = jnp.maximum(acc1 + b1_ref[...], 0.0)   # f32 (tb, 128)

    # ---- Layers 2 & 3 on the MXU: bf16 operands, f32 accumulate, f32 epilogue.
    h2 = jnp.dot(h1.astype(jnp.bfloat16), w2_ref[...],
                 preferred_element_type=jnp.float32) + b2_ref[...]
    h2 = jnp.maximum(h2, 0.0)
    out = jnp.dot(h2.astype(jnp.bfloat16), w3_ref[...],
                  preferred_element_type=jnp.float32) + b3_ref[...]
    o_ref[...] = out.astype(o_ref.dtype)


@functools.partial(jax.jit, static_argnames=("output_dim",))
def simple_mlp_forward(x, params, output_dim=OUTPUT_DIM):
    w1, b1, w2, b2, w3, b3 = params
    B, D = x.shape
    assert D == w1.shape[0]

    tb = _choose_tb(B, _num_tensorcores())
    grid = (pl.cdiv(B, tb),)

    # bf16 operands for the matmuls (halves HBM read of x and the weight
    # footprint); biases stay f32 so the accumulate/epilogue is f32.
    out_dtype = x.dtype
    xb = x.astype(jnp.bfloat16)
    w1b = w1.astype(jnp.bfloat16)
    w2b = w2.astype(jnp.bfloat16)
    w3b = w3.astype(jnp.bfloat16)

    flops = 2 * B * (D * HIDDEN1 + HIDDEN1 * HIDDEN2 + HIDDEN2 * output_dim)
    bytes_accessed = (
        B * D * xb.dtype.itemsize                       # read x (bf16)
        + B * output_dim * jnp.dtype(out_dtype).itemsize  # write out
        + sum(p.size * 2 for p in (w1b, w2b, w3b))      # weights (one-time, bf16)
        + sum(p.size * p.dtype.itemsize for p in (b1, b2, b3))
    )

    cp_kwargs = dict(dimension_semantics=("parallel",))
    if tb >= 1024:
        # v5e default scoped-VMEM limit is 16MiB; lane-padded x/out tiles plus
        # double buffering can exceed it at large TB. Cheap insurance (48MiB is
        # still below v7x's 64MiB physical VMEM).
        cp_kwargs["vmem_limit_bytes"] = 48 << 20

    out = pl.pallas_call(
        _mlp_kernel,
        out_shape=jax.ShapeDtypeStruct((B, output_dim), out_dtype),
        grid_spec=pltpu.PrefetchScalarGridSpec(
            num_scalar_prefetch=0,
            grid=grid,
            in_specs=[
                pl.BlockSpec((tb, D), lambda i: (i, 0)),               # x tile
                pl.BlockSpec((D, HIDDEN1), lambda i: (0, 0)),          # W1 (resident)
                pl.BlockSpec((1, HIDDEN1), lambda i: (0, 0)),          # b1
                pl.BlockSpec((HIDDEN1, HIDDEN2), lambda i: (0, 0)),    # W2
                pl.BlockSpec((1, HIDDEN2), lambda i: (0, 0)),          # b2
                pl.BlockSpec((HIDDEN2, output_dim), lambda i: (0, 0)), # W3
                pl.BlockSpec((1, output_dim), lambda i: (0, 0)),       # b3
            ],
            out_specs=pl.BlockSpec((tb, output_dim), lambda i: (i, 0)),
        ),
        compiler_params=pltpu.CompilerParams(**cp_kwargs),
        cost_estimate=pl.CostEstimate(
            flops=flops, transcendentals=0, bytes_accessed=bytes_accessed),
    )(xb, w1b, b1, w2b, b2, w3b, b3)

    if output_dim == 1:
        out = jnp.squeeze(out, axis=-1)
    return out


def init_params(key, input_dim=INPUT_DIM, output_dim=OUTPUT_DIM):
    """Deterministic init mimicking PyTorch nn.Linear default
    (U(-1/sqrt(fan_in), 1/sqrt(fan_in))). Weights stored transposed to
    (in_features, out_features)."""
    dims = [(input_dim, HIDDEN1), (HIDDEN1, HIDDEN2), (HIDDEN2, output_dim)]
    params = []
    for (fan_in, fan_out) in dims:
        key, kw, kb = jax.random.split(key, 3)
        bound = 1.0 / math.sqrt(fan_in)
        w = jax.random.uniform(kw, (fan_in, fan_out), jnp.float32, -bound, bound)
        b = jax.random.uniform(kb, (1, fan_out), jnp.float32, -bound, bound)
        params.extend([w, b])
    return tuple(params)


def _reference_forward(x, params, output_dim=OUTPUT_DIM):
    """Matches the kernel's numerics: bf16-rounded matmul operands, f32
    accumulate, f32 bias/ReLU."""
    w1, b1, w2, b2, w3, b3 = params

    def bf(a):
        return a.astype(jnp.bfloat16).astype(jnp.float32)

    h1 = jnp.maximum(bf(x) @ bf(w1) + b1, 0.0)
    h2 = jnp.maximum(bf(h1) @ bf(w2) + b2, 0.0)
    out = bf(h2) @ bf(w3) + b3
    if output_dim == 1:
        out = jnp.squeeze(out, axis=-1)
    return out


if __name__ == "__main__":
    key = jax.random.PRNGKey(0)
    kx, kp, kx2 = jax.random.split(key, 3)

    params = init_params(kp)

    # Small batch (single partial block, no host-side padding).
    batch = 2
    x = jax.random.normal(kx, (batch, INPUT_DIM), jnp.float32)
    out = jax.block_until_ready(simple_mlp_forward(x, params))
    ref = _reference_forward(x, params)
    assert out.shape == (batch, OUTPUT_DIM), out.shape
    assert jnp.allclose(out, ref, atol=1e-3, rtol=1e-3), "mismatch vs reference (small batch)"

    # Larger batch (multi-step grid + partial tail block, v7x balanced split).
    batch2 = 2561
    x2 = jax.random.normal(kx2, (batch2, INPUT_DIM), jnp.float32)
    out2 = jax.block_until_ready(simple_mlp_forward(x2, params))
    ref2 = _reference_forward(x2, params)
    assert out2.shape == (batch2, OUTPUT_DIM), out2.shape
    assert jnp.allclose(out2, ref2, atol=1e-3, rtol=1e-3), "mismatch vs reference (large batch)"

    print("KERNEL_OK")
</pallas_src>

<mosaic_0001>
module attributes {stable_mosaic.version = 11 : i64} {
  func.func @_mlp_kernel(%arg0: i32, %arg1: memref<8x4xbf16, #tpu.memory_space<vmem>>, %arg2: memref<4x128xbf16, #tpu.memory_space<vmem>>, %arg3: memref<1x128xf32, #tpu.memory_space<vmem>>, %arg4: memref<128x64xbf16, #tpu.memory_space<vmem>>, %arg5: memref<1x64xf32, #tpu.memory_space<vmem>>, %arg6: memref<64x3xbf16, #tpu.memory_space<vmem>>, %arg7: memref<1x3xf32, #tpu.memory_space<vmem>>, %arg8: memref<8x3xf32, #tpu.memory_space<vmem>>) attributes {dimension_semantics = [#tpu.dimension_semantics<parallel>], iteration_bounds = array<i64: 1>, scalar_prefetch = 0 : i64, scratch_operands = 0 : i64, tpu.core_type = #tpu.core_type<tc>, window_params = [{transform_indices = @transform_0, window_bounds = array<i64: 8, 4>}, {pipeline_mode = #tpu.pipeline_mode<synchronous>, transform_indices = @transform_1, window_bounds = array<i64: 4, 128>}, {pipeline_mode = #tpu.pipeline_mode<synchronous>, transform_indices = @transform_2, window_bounds = array<i64: 1, 128>}, {pipeline_mode = #tpu.pipeline_mode<synchronous>, transform_indices = @transform_3, window_bounds = array<i64: 128, 64>}, {pipeline_mode = #tpu.pipeline_mode<synchronous>, transform_indices = @transform_4, window_bounds = array<i64: 1, 64>}, {pipeline_mode = #tpu.pipeline_mode<synchronous>, transform_indices = @transform_5, window_bounds = array<i64: 64, 3>}, {pipeline_mode = #tpu.pipeline_mode<synchronous>, transform_indices = @transform_6, window_bounds = array<i64: 1, 3>}, {transform_indices = @transform_7, window_bounds = array<i64: 8, 3>}]} {
    %c0 = arith.constant 0 : index
    %c0_0 = arith.constant 0 : index
    %0 = vector.load %arg1[%c0, %c0_0] : memref<8x4xbf16, #tpu.memory_space<vmem>>, vector<8x4xbf16>
    %1 = arith.extf %0 : vector<8x4xbf16> to vector<8x4xf32>
    %c0_1 = arith.constant 0 : index
    %c0_2 = arith.constant 0 : index
    %2 = vector.load %arg2[%c0_1, %c0_2] : memref<4x128xbf16, #tpu.memory_space<vmem>>, vector<4x128xbf16>
    %3 = arith.extf %2 : vector<4x128xbf16> to vector<4x128xf32>
    %4 = vector.extract_strided_slice %1 {offsets = [0, 0], sizes = [8, 1], strides = [1, 1]} : vector<8x4xf32> to vector<8x1xf32>
    %5 = vector.extract_strided_slice %3 {offsets = [0, 0], sizes = [1, 128], strides = [1, 1]} : vector<4x128xf32> to vector<1x128xf32>
    %6 = vector.broadcast %4 : vector<8x1xf32> to vector<8x128xf32>
    %7 = vector.broadcast %5 : vector<1x128xf32> to vector<8x128xf32>
    %8 = arith.mulf %6, %7 : vector<8x128xf32>
    %9 = vector.extract_strided_slice %1 {offsets = [0, 1], sizes = [8, 1], strides = [1, 1]} : vector<8x4xf32> to vector<8x1xf32>
    %10 = vector.extract_strided_slice %3 {offsets = [1, 0], sizes = [1, 128], strides = [1, 1]} : vector<4x128xf32> to vector<1x128xf32>
    %11 = vector.broadcast %9 : vector<8x1xf32> to vector<8x128xf32>
    %12 = vector.broadcast %10 : vector<1x128xf32> to vector<8x128xf32>
    %13 = arith.mulf %11, %12 : vector<8x128xf32>
    %14 = arith.addf %8, %13 : vector<8x128xf32>
    %15 = vector.extract_strided_slice %1 {offsets = [0, 2], sizes = [8, 1], strides = [1, 1]} : vector<8x4xf32> to vector<8x1xf32>
    %16 = vector.extract_strided_slice %3 {offsets = [2, 0], sizes = [1, 128], strides = [1, 1]} : vector<4x128xf32> to vector<1x128xf32>
    %17 = vector.broadcast %15 : vector<8x1xf32> to vector<8x128xf32>
    %18 = vector.broadcast %16 : vector<1x128xf32> to vector<8x128xf32>
    %19 = arith.mulf %17, %18 : vector<8x128xf32>
    %20 = arith.addf %14, %19 : vector<8x128xf32>
    %21 = vector.extract_strided_slice %1 {offsets = [0, 3], sizes = [8, 1], strides = [1, 1]} : vector<8x4xf32> to vector<8x1xf32>
    %22 = vector.extract_strided_slice %3 {offsets = [3, 0], sizes = [1, 128], strides = [1, 1]} : vector<4x128xf32> to vector<1x128xf32>
    %23 = vector.broadcast %21 : vector<8x1xf32> to vector<8x128xf32>
    %24 = vector.broadcast %22 : vector<1x128xf32> to vector<8x128xf32>
    %25 = arith.mulf %23, %24 : vector<8x128xf32>
    %26 = arith.addf %20, %25 : vector<8x128xf32>
    %c0_3 = arith.constant 0 : index
    %c0_4 = arith.constant 0 : index
    %27 = vector.load %arg3[%c0_3, %c0_4] : memref<1x128xf32, #tpu.memory_space<vmem>>, vector<1x128xf32>
    %28 = vector.broadcast %27 : vector<1x128xf32> to vector<8x128xf32>
    %29 = arith.addf %26, %28 : vector<8x128xf32>
    %cst = arith.constant 0.000000e+00 : f32
    %30 = vector.broadcast %cst : f32 to vector<8x128xf32>
    %31 = arith.maximumf %29, %30 : vector<8x128xf32>
    %32 = arith.truncf %31 : vector<8x128xf32> to vector<8x128xbf16>
    %c0_5 = arith.constant 0 : index
    %c0_6 = arith.constant 0 : index
    %33 = vector.load %arg4[%c0_5, %c0_6] : memref<128x64xbf16, #tpu.memory_space<vmem>>, vector<128x64xbf16>
    %cst_7 = arith.constant dense<0.000000e+00> : vector<8x64xf32>
    %34 = tpu.matmul %32, %33, %cst_7 {dimension_numbers = #tpu.dot_dimension_numbers<[1], [0], [0], [1], [0, 0, 1, 1], [], []>} : vector<8x128xbf16>, vector<128x64xbf16>, vector<8x64xf32> -> vector<8x64xf32>
    %c0_8 = arith.constant 0 : index
    %c0_9 = arith.constant 0 : index
    %35 = vector.load %arg5[%c0_8, %c0_9] : memref<1x64xf32, #tpu.memory_space<vmem>>, vector<1x64xf32>
    %36 = vector.broadcast %35 : vector<1x64xf32> to vector<8x64xf32>
    %37 = arith.addf %34, %36 : vector<8x64xf32>
    %cst_10 = arith.constant 0.000000e+00 : f32
    %38 = vector.broadcast %cst_10 : f32 to vector<8x64xf32>
    %39 = arith.maximumf %37, %38 : vector<8x64xf32>
    %40 = arith.truncf %39 : vector<8x64xf32> to vector<8x64xbf16>
    %c0_11 = arith.constant 0 : index
    %c0_12 = arith.constant 0 : index
    %41 = vector.load %arg6[%c0_11, %c0_12] : memref<64x3xbf16, #tpu.memory_space<vmem>>, vector<64x3xbf16>
    %cst_13 = arith.constant dense<0.000000e+00> : vector<8x3xf32>
    %42 = tpu.matmul %40, %41, %cst_13 {dimension_numbers = #tpu.dot_dimension_numbers<[1], [0], [0], [1], [0, 0, 1, 1], [], []>} : vector<8x64xbf16>, vector<64x3xbf16>, vector<8x3xf32> -> vector<8x3xf32>
    %c0_14 = arith.constant 0 : index
    %c0_15 = arith.constant 0 : index
    %43 = vector.load %arg7[%c0_14, %c0_15] : memref<1x3xf32, #tpu.memory_space<vmem>>, vector<1x3xf32>
    %44 = vector.broadcast %43 : vector<1x3xf32> to vector<8x3xf32>
    %45 = arith.addf %42, %44 : vector<8x3xf32>
    %c0_16 = arith.constant 0 : index
    %c0_17 = arith.constant 0 : index
    %46 = vector.load %arg8[%c0_16, %c0_17] : memref<8x3xf32, #tpu.memory_space<vmem>>, vector<8x3xf32>
    tpu.vector_store %arg8[%c0_16, %c0_17], %45 {strides = array<i32>} : memref<8x3xf32, #tpu.memory_space<vmem>>, vector<8x3xf32>,
    return
  }
  func.func @transform_0(%arg0: i32) -> (i32, i32) {
    %c0_i32 = arith.constant 0 : i32
    %c0_i32_0 = arith.constant 0 : i32
    return %arg0, %c0_i32 : i32, i32
  }
  func.func @transform_1(%arg0: i32) -> (i32, i32) {
    %c0_i32 = arith.constant 0 : i32
    %c0_i32_0 = arith.constant 0 : i32
    %c0_i32_1 = arith.constant 0 : i32
    return %c0_i32, %c0_i32_0 : i32, i32
  }
  func.func @transform_2(%arg0: i32) -> (i32, i32) {
    %c0_i32 = arith.constant 0 : i32
    %c0_i32_0 = arith.constant 0 : i32
    %c0_i32_1 = arith.constant 0 : i32
    return %c0_i32, %c0_i32_0 : i32, i32
  }
  func.func @transform_3(%arg0: i32) -> (i32, i32) {
    %c0_i32 = arith.constant 0 : i32
    %c0_i32_0 = arith.constant 0 : i32
    %c0_i32_1 = arith.constant 0 : i32
    return %c0_i32, %c0_i32_0 : i32, i32
  }
  func.func @transform_4(%arg0: i32) -> (i32, i32) {
    %c0_i32 = arith.constant 0 : i32
    %c0_i32_0 = arith.constant 0 : i32
    %c0_i32_1 = arith.constant 0 : i32
    return %c0_i32, %c0_i32_0 : i32, i32
  }
  func.func @transform_5(%arg0: i32) -> (i32, i32) {
    %c0_i32 = arith.constant 0 : i32
    %c0_i32_0 = arith.constant 0 : i32
    %c0_i32_1 = arith.constant 0 : i32
    return %c0_i32, %c0_i32_0 : i32, i32
  }
  func.func @transform_6(%arg0: i32) -> (i32, i32) {
    %c0_i32 = arith.constant 0 : i32
    %c0_i32_0 = arith.constant 0 : i32
    %c0_i32_1 = arith.constant 0 : i32
    return %c0_i32, %c0_i32_0 : i32, i32
  }
  func.func @transform_7(%arg0: i32) -> (i32, i32) {
    %c0_i32 = arith.constant 0 : i32
    %c0_i32_0 = arith.constant 0 : i32
    return %arg0, %c0_i32 : i32, i32
  }
}

</mosaic_0001>

<llo_original>
// kernel: simple_mlp_forward.1
$region0: #{simple_mlp_forward.1}
  #allocation0 [shape = 'u32[]', space=smem, size = 0x4, offset = 0x4, fixed_abs, tag = 'smem constant byte address 0x4 - core index']
  #allocation1 [shape = 'u32[144,128]{1,0:T(1,128)}', space=vmem, size = 0x12000, scoped, tag = 'internal scratch']
  %s0 = inlined_call_operand.vmem [shape: bf16[2,4], index: 0, kind: input, shape index: {}]
  %s1 = inlined_call_operand.vmem [shape: bf16[4,128], index: 1, kind: input, shape index: {}]
  %s2 = inlined_call_operand.vmem [shape: f32[1,128], index: 2, kind: input, shape index: {}]
  %s3 = inlined_call_operand.vmem [shape: bf16[128,64], index: 3, kind: input, shape index: {}]
  %s4 = inlined_call_operand.vmem [shape: f32[1,64], index: 4, kind: input, shape index: {}]
  %s5 = inlined_call_operand.vmem [shape: bf16[64,3], index: 5, kind: input, shape index: {}]
  %s6 = inlined_call_operand.vmem [shape: f32[1,3], index: 6, kind: input, shape index: {}]
  %s7 = inlined_call_operand.hbm [shape: f32[2,3], index: 7, kind: output, shape index: {}]
  %s8 = sld [smem:[#allocation0]]
  $region38: #{simple_mlp_forward.1} parent=0
    _
  %s10 = ssub.s32 1, %s8
  %s11 = scalar_select 0, %s10, %s8
  $region1: #{simple_mlp_forward.1} parent=0
    #allocation2 [shape = 'u8[4096]{0}', space=vmem, size = 0x1000, scoped, tag = 'output window, operand 0, single buffered']
    #allocation3 [shape = 's32[1]{0}', space=sflag, size = 0x4, scoped, tag = 'scoped memory for simple_mlp_forward.1']
    %12 = vsyncpa [#allocation3], 0
    // Predicated region
    $region2: #{simple_mlp_forward.1} parent=1 // pred_check
      _
    $region3: #{simple_mlp_forward.1} parent=1 // pred_check_branch
      %14 = sbr.rel (0) target = $region5
    $region4: #{simple_mlp_forward.1} parent=1 // pred_region
      _
    $region5: #{simple_mlp_forward.1} parent=1 // pred_fallthru
      _
    // Predicated region
    $region6: #{simple_mlp_forward.1} parent=1 // pred_check
      _
    $region7: #{simple_mlp_forward.1} parent=1 // pred_check_branch
      %16 = sbr.rel (0) target = $region9
    $region8: #{simple_mlp_forward.1} parent=1 // pred_region
      _
    $region9: #{simple_mlp_forward.1} parent=1 // pred_fallthru
      _
    // Predicated region
    $region10: #{simple_mlp_forward.1} parent=1 // pred_check
      _
    $region11: #{simple_mlp_forward.1} parent=1 // pred_check_branch
      %18 = sbr.rel (0) target = $region13
    $region12: #{simple_mlp_forward.1} parent=1 // pred_region
      _
    $region13: #{simple_mlp_forward.1} parent=1 // pred_fallthru
      _
    // Predicated region
    $region14: #{simple_mlp_forward.1} parent=1 // pred_check
      _
    $region15: #{simple_mlp_forward.1} parent=1 // pred_check_branch
      %20 = sbr.rel (0) target = $region17
    $region16: #{simple_mlp_forward.1} parent=1 // pred_region
      _
    $region17: #{simple_mlp_forward.1} parent=1 // pred_fallthru
      _
    // Predicated region
    $region18: #{simple_mlp_forward.1} parent=1 // pred_check
      _
    $region19: #{simple_mlp_forward.1} parent=1 // pred_check_branch
      %22 = sbr.rel (0) target = $region21
    $region20: #{simple_mlp_forward.1} parent=1 // pred_region
      _
    $region21: #{simple_mlp_forward.1} parent=1 // pred_fallthru
      _
    // Predicated region
    $region22: #{simple_mlp_forward.1} parent=1 // pred_check
      _
    $region23: #{simple_mlp_forward.1} parent=1 // pred_check_branch
      %24 = sbr.rel (0) target = $region25
    $region24: #{simple_mlp_forward.1} parent=1 // pred_region
      _
    $region25: #{simple_mlp_forward.1} parent=1 // pred_fallthru
      _
    // Predicated region
    $region26: #{simple_mlp_forward.1} parent=1 // pred_check
      _
    $region27: #{simple_mlp_forward.1} parent=1 // pred_check_branch
      %26 = sbr.rel (0) target = $region29
    $region28: #{simple_mlp_forward.1} parent=1 // pred_region
      _
    $region29: #{simple_mlp_forward.1} parent=1 // pred_fallthru
      _
    %v28 = vld [vmem:[%s0] sm:$0x1]
    %v29 = vld [vmem:[%s0 + $0x1] sm:$0x1]
    %v30 = vld [vmem:[%s0 + $0x2] sm:$0x1]
    %v31 = vld [vmem:[%s0 + $0x3] sm:$0x1]
    %v32 = vunpack.c.l.bf16 %v28
    %v33 = vunpack.c.l.bf16 %v29
    %v34 = vunpack.c.l.bf16 %v30
    %v35 = vunpack.c.l.bf16 %v31
    %v36 = vld [vmem:[%s1] sm:$0x3]
    %v37 = vunpack.c.l.bf16 %v36
    %39 = vset.pattern.permute.xlu0 0
    %40 = vperm.xlu0 %39, %v32
    %v41 = vpop.permute.xlu0 %40
    %v44 = vunpack.c.l.s4 269488144
    %v45 = vunpack.c.0.s8 %v44
    %v46 = vlaneseq
    %v47 = vshrl.u32 %v46, 7
    %v48 = vsub.s32 %v45, %v47
    %v49 = vrot.slane %v41, %v48
    %51 = vset.pattern.permute.xlu0 0
    %52 = vperm.xlu0 %51, %v33
    %v53 = vpop.permute.xlu0 %52
    %v56 = vunpack.c.l.s4 269488144
    %v57 = vunpack.c.0.s8 %v56
    %v58 = vlaneseq
    %v59 = vshrl.u32 %v58, 7
    %v60 = vsub.s32 %v57, %v59
    %v61 = vrot.slane %v53, %v60
    %63 = vset.pattern.permute.xlu0 0
    %64 = vperm.xlu0 %63, %v34
    %v65 = vpop.permute.xlu0 %64
    %v68 = vunpack.c.l.s4 269488144
    %v69 = vunpack.c.0.s8 %v68
    %v70 = vlaneseq
    %v71 = vshrl.u32 %v70, 7
    %v72 = vsub.s32 %v69, %v71
    %v73 = vrot.slane %v65, %v72
    %75 = vset.pattern.permute.xlu0 0
    %76 = vperm.xlu0 %75, %v35
    %v77 = vpop.permute.xlu0 %76
    %v80 = vunpack.c.l.s4 269488144
    %v81 = vunpack.c.0.s8 %v80
    %v82 = vlaneseq
    %v83 = vshrl.u32 %v82, 7
    %v84 = vsub.s32 %v81, %v83
    %v85 = vrot.slane %v77, %v84
    %v86 = vlaneseq
    %v87 = vshrl.u32 %v86, 7
    %v88 = vsub.s32 0, %v87
    %v89 = vrot.slane %v37, %v88
    %v91 = vcombine.high %v89, %v89
    %v93 = vunpack.c.l.s4 1983009808
    %v94 = vunpack.c.0.s8 %v93
    %v95 = vlaneseq
    %v96 = vshrl.u32 %v95, 7
    %v97 = vsub.s32 %v94, %v96
    %v98 = vrot.slane %v89, %v97
    %v100 = vunpack.c.l.s4 1983009808
    %v101 = vunpack.c.0.s8 %v100
    %v102 = vlaneseq
    %v103 = vshrl.u32 %v102, 7
    %v104 = vsub.s32 %v101, %v103
    %v105 = vrot.slane %v91, %v104
    %v106 = vcombine.high %v98, %v98
    %v107 = vcombine.high %v105, %v105
    %v112 = vmul.f32 %v49, %v98
    %v113 = vmul.f32 %v61, %v106
    %v114 = vmul.f32 %v73, %v105
    %v115 = vmul.f32 %v85, %v107
    %116 = vset.pattern.permute.xlu0 1
    %117 = vperm.xlu0 %116, %v32
    %v118 = vpop.permute.xlu0 %117
    %v121 = vunpack.c.l.s4 269488144
    %v122 = vunpack.c.0.s8 %v121
    %v123 = vlaneseq
    %v124 = vshrl.u32 %v123, 7
    %v125 = vsub.s32 %v122, %v124
    %v126 = vrot.slane %v118, %v125
    %127 = vset.pattern.permute.xlu0 1
    %128 = vperm.xlu0 %127, %v33
    %v129 = vpop.permute.xlu0 %128
    %v132 = vunpack.c.l.s4 269488144
    %v133 = vunpack.c.0.s8 %v132
    %v134 = vlaneseq
    %v135 = vshrl.u32 %v134, 7
    %v136 = vsub.s32 %v133, %v135
    %v137 = vrot.slane %v129, %v136
    %138 = vset.pattern.permute.xlu0 1
    %139 = vperm.xlu0 %138, %v34
    %v140 = vpop.permute.xlu0 %139
    %v143 = vunpack.c.l.s4 269488144
    %v144 = vunpack.c.0.s8 %v143
    %v145 = vlaneseq
    %v146 = vshrl.u32 %v145, 7
    %v147 = vsub.s32 %v144, %v146
    %v148 = vrot.slane %v140, %v147
    %149 = vset.pattern.permute.xlu0 1
    %150 = vperm.xlu0 %149, %v35
    %v151 = vpop.permute.xlu0 %150
    %v154 = vunpack.c.l.s4 269488144
    %v155 = vunpack.c.0.s8 %v154
    %v156 = vlaneseq
    %v157 = vshrl.u32 %v156, 7
    %v158 = vsub.s32 %v155, %v157
    %v159 = vrot.slane %v151, %v158
    %v160 = vlaneseq
    %v161 = vshrl.u32 %v160, 7
    %v162 = vsub.s32 1, %v161
    %v163 = vrot.slane %v37, %v162
    %v165 = vcombine.high %v163, %v163
    %v167 = vunpack.c.l.s4 1983009808
    %v168 = vunpack.c.0.s8 %v167
    %v169 = vlaneseq
    %v170 = vshrl.u32 %v169, 7
    %v171 = vsub.s32 %v168, %v170
    %v172 = vrot.slane %v163, %v171
    %v174 = vunpack.c.l.s4 1983009808
    %v175 = vunpack.c.0.s8 %v174
    %v176 = vlaneseq
    %v177 = vshrl.u32 %v176, 7
    %v178 = vsub.s32 %v175, %v177
    %v179 = vrot.slane %v165, %v178
    %v180 = vcombine.high %v172, %v172
    %v181 = vcombine.high %v179, %v179
    %v186 = vmul.f32 %v126, %v172
    %v187 = vmul.f32 %v137, %v180
    %v188 = vmul.f32 %v148, %v179
    %v189 = vmul.f32 %v159, %v181
    %v190 = vadd.f32 %v112, %v186
    %v191 = vadd.f32 %v113, %v187
    %v192 = vadd.f32 %v114, %v188
    %v193 = vadd.f32 %v115, %v189
    %194 = vset.pattern.permute.xlu0 2
    %195 = vperm.xlu0 %194, %v32
    %v196 = vpop.permute.xlu0 %195
    %v199 = vunpack.c.l.s4 269488144
    %v200 = vunpack.c.0.s8 %v199
    %v201 = vlaneseq
    %v202 = vshrl.u32 %v201, 7
    %v203 = vsub.s32 %v200, %v202
    %v204 = vrot.slane %v196, %v203
    %205 = vset.pattern.permute.xlu0 2
    %206 = vperm.xlu0 %205, %v33
    %v207 = vpop.permute.xlu0 %206
    %v210 = vunpack.c.l.s4 269488144
    %v211 = vunpack.c.0.s8 %v210
    %v212 = vlaneseq
    %v213 = vshrl.u32 %v212, 7
    %v214 = vsub.s32 %v211, %v213
    %v215 = vrot.slane %v207, %v214
    %216 = vset.pattern.permute.xlu0 2
    %217 = vperm.xlu0 %216, %v34
    %v218 = vpop.permute.xlu0 %217
    %v221 = vunpack.c.l.s4 269488144
    %v222 = vunpack.c.0.s8 %v221
    %v223 = vlaneseq
    %v224 = vshrl.u32 %v223, 7
    %v225 = vsub.s32 %v222, %v224
    %v226 = vrot.slane %v218, %v225
    %227 = vset.pattern.permute.xlu0 2
    %228 = vperm.xlu0 %227, %v35
    %v229 = vpop.permute.xlu0 %228
    %v232 = vunpack.c.l.s4 269488144
    %v233 = vunpack.c.0.s8 %v232
    %v234 = vlaneseq
    %v235 = vshrl.u32 %v234, 7
    %v236 = vsub.s32 %v233, %v235
    %v237 = vrot.slane %v229, %v236
    %v238 = vlaneseq
    %v239 = vshrl.u32 %v238, 7
    %v240 = vsub.s32 2, %v239
    %v241 = vrot.slane %v37, %v240
    %v243 = vcombine.high %v241, %v241
    %v245 = vunpack.c.l.s4 1983009808
    %v246 = vunpack.c.0.s8 %v245
    %v247 = vlaneseq
    %v248 = vshrl.u32 %v247, 7
    %v249 = vsub.s32 %v246, %v248
    %v250 = vrot.slane %v241, %v249
    %v252 = vunpack.c.l.s4 1983009808
    %v253 = vunpack.c.0.s8 %v252
    %v254 = vlaneseq
    %v255 = vshrl.u32 %v254, 7
    %v256 = vsub.s32 %v253, %v255
    %v257 = vrot.slane %v243, %v256
    %v258 = vcombine.high %v250, %v250
    %v259 = vcombine.high %v257, %v257
    %v264 = vmul.f32 %v204, %v250
    %v265 = vmul.f32 %v215, %v258
    %v266 = vmul.f32 %v226, %v257
    %v267 = vmul.f32 %v237, %v259
    %v268 = vadd.f32 %v190, %v264
    %v269 = vadd.f32 %v191, %v265
    %v270 = vadd.f32 %v192, %v266
    %v271 = vadd.f32 %v193, %v267
    %272 = vset.pattern.permute.xlu0 3
    %273 = vperm.xlu0 %272, %v32
    %v274 = vpop.permute.xlu0 %273
    %v277 = vunpack.c.l.s4 269488144
    %v278 = vunpack.c.0.s8 %v277
    %v279 = vlaneseq
    %v280 = vshrl.u32 %v279, 7
    %v281 = vsub.s32 %v278, %v280
    %v282 = vrot.slane %v274, %v281
    %283 = vset.pattern.permute.xlu0 3
    %284 = vperm.xlu0 %283, %v33
    %v285 = vpop.permute.xlu0 %284
    %v288 = vunpack.c.l.s4 269488144
    %v289 = vunpack.c.0.s8 %v288
    %v290 = vlaneseq
    %v291 = vshrl.u32 %v290, 7
    %v292 = vsub.s32 %v289, %v291
    %v293 = vrot.slane %v285, %v292
    %294 = vset.pattern.permute.xlu0 3
    %295 = vperm.xlu0 %294, %v34
    %v296 = vpop.permute.xlu0 %295
    %v299 = vunpack.c.l.s4 269488144
    %v300 = vunpack.c.0.s8 %v299
    %v301 = vlaneseq
    %v302 = vshrl.u32 %v301, 7
    %v303 = vsub.s32 %v300, %v302
    %v304 = vrot.slane %v296, %v303
    %305 = vset.pattern.permute.xlu0 3
    %306 = vperm.xlu0 %305, %v35
    %v307 = vpop.permute.xlu0 %306
    %v310 = vunpack.c.l.s4 269488144
    %v311 = vunpack.c.0.s8 %v310
    %v312 = vlaneseq
    %v313 = vshrl.u32 %v312, 7
    %v314 = vsub.s32 %v311, %v313
    %v315 = vrot.slane %v307, %v314
    %v316 = vlaneseq
    %v317 = vshrl.u32 %v316, 7
    %v318 = vsub.s32 3, %v317
    %v319 = vrot.slane %v37, %v318
    %v321 = vcombine.high %v319, %v319
    %v323 = vunpack.c.l.s4 1983009808
    %v324 = vunpack.c.0.s8 %v323
    %v325 = vlaneseq
    %v326 = vshrl.u32 %v325, 7
    %v327 = vsub.s32 %v324, %v326
    %v328 = vrot.slane %v319, %v327
    %v330 = vunpack.c.l.s4 1983009808
    %v331 = vunpack.c.0.s8 %v330
    %v332 = vlaneseq
    %v333 = vshrl.u32 %v332, 7
    %v334 = vsub.s32 %v331, %v333
    %v335 = vrot.slane %v321, %v334
    %v336 = vcombine.high %v328, %v328
    %v337 = vcombine.high %v335, %v335
    %v342 = vmul.f32 %v282, %v328
    %v343 = vmul.f32 %v293, %v336
    %v344 = vmul.f32 %v304, %v335
    %v345 = vmul.f32 %v315, %v337
    %v346 = vadd.f32 %v268, %v342
    %v347 = vadd.f32 %v269, %v343
    %v348 = vadd.f32 %v270, %v344
    %v349 = vadd.f32 %v271, %v345
    %v350 = vld [vmem:[%s2] sm:$0x1]
    %v352 = vlaneseq
    %v353 = vshrl.u32 %v352, 7
    %v354 = vsub.s32 0, %v353
    %v355 = vrot.slane %v350, %v354
    %v356 = vcombine.high %v355, %v355
    %v358 = vunpack.c.l.s4 1983009808
    %v359 = vunpack.c.0.s8 %v358
    %v360 = vlaneseq
    %v361 = vshrl.u32 %v360, 7
    %v362 = vsub.s32 %v359, %v361
    %v363 = vrot.slane %v355, %v362
    %v365 = vunpack.c.l.s4 1983009808
    %v366 = vunpack.c.0.s8 %v365
    %v367 = vlaneseq
    %v368 = vshrl.u32 %v367, 7
    %v369 = vsub.s32 %v366, %v368
    %v370 = vrot.slane %v356, %v369
    %v371 = vcombine.high %v363, %v363
    %v372 = vcombine.high %v370, %v370
    %v377 = vadd.f32 %v346, %v363
    %v378 = vadd.f32 %v347, %v371
    %v379 = vadd.f32 %v348, %v370
    %v380 = vadd.f32 %v349, %v372
    %v381 = vmax.f32 %v377, 0.0
    %v382 = vmax.f32 %v378, 0.0
    %v383 = vmax.f32 %v379, 0.0
    %v384 = vmax.f32 %v380, 0.0
    %v389 = vcombine.low %v381, %v382
    %v390 = vcombine.low %v383, %v384
    %v392 = vunpack.c.l.s4 1983009808
    %v393 = vunpack.c.0.s8 %v392
    %v394 = vlaneseq
    %v395 = vshrl.u32 %v394, 7
    %v396 = vsub.s32 %v393, %v395
    %v397 = vrot.slane %v389, %v396
    %v399 = vunpack.c.l.s4 1983009808
    %v400 = vunpack.c.0.s8 %v399
    %v401 = vlaneseq
    %v402 = vshrl.u32 %v401, 7
    %v403 = vsub.s32 %v400, %v402
    %v404 = vrot.slane %v390, %v403
    %v405 = vcombine.low %v397, %v404
    %v407 = vpack.c.bf16 %v405, %v405
    %v408 = vld [vmem:[%s3] sm:$0xf]
    %v409 = vld [vmem:[%s3 + $0x4] sm:$0xf]
    %v410 = vld [vmem:[%s3 + $0x8] sm:$0xf]
    %v411 = vld [vmem:[%s3 + $0xc] sm:$0xf]
    %v412 = vld [vmem:[%s3 + $0x10] sm:$0xf]
    %v413 = vld [vmem:[%s3 + $0x14] sm:$0xf]
    %v414 = vld [vmem:[%s3 + $0x18] sm:$0xf]
    %v415 = vld [vmem:[%s3 + $0x1c] sm:$0xf]
    %v416 = vld [vmem:[%s3 + $0x20] sm:$0xf]
    %v417 = vld [vmem:[%s3 + $0x24] sm:$0xf]
    %v418 = vld [vmem:[%s3 + $0x28] sm:$0xf]
    %v419 = vld [vmem:[%s3 + $0x2c] sm:$0xf]
    %v420 = vld [vmem:[%s3 + $0x30] sm:$0xf]
    %v421 = vld [vmem:[%s3 + $0x34] sm:$0xf]
    %v422 = vld [vmem:[%s3 + $0x38] sm:$0xf]
    %v423 = vld [vmem:[%s3 + $0x3c] sm:$0xf]
    %v424 = vld [vmem:[%s4] sm:$0x1]
    %v426 = vlaneseq
    %v427 = vshrl.u32 %v426, 7
    %v428 = vsub.s32 0, %v427
    %v429 = vrot.slane %v424, %v428
    %v447 = vunpack.c.l.b16 %v408
    %v448 = vunpack.c.l.b16 %v409
    %v449 = vunpack.c.l.b16 %v410
    %v450 = vunpack.c.l.b16 %v411
    %v451 = vunpack.c.l.b16 %v412
    %v452 = vunpack.c.l.b16 %v413
    %v453 = vunpack.c.l.b16 %v414
    %v454 = vunpack.c.l.b16 %v415
    %v455 = vunpack.c.l.b16 %v416
    %v456 = vunpack.c.l.b16 %v417
    %v457 = vunpack.c.l.b16 %v418
    %v458 = vunpack.c.l.b16 %v419
    %v459 = vunpack.c.l.b16 %v420
    %v460 = vunpack.c.l.b16 %v421
    %v461 = vunpack.c.l.b16 %v422
    %v462 = vunpack.c.l.b16 %v423
    %v463 = vpack.c.b16 %v448, %v447
    %v464 = vpack.c.b16 %v450, %v449
    %v465 = vpack.c.b16 %v452, %v451
    %v466 = vpack.c.b16 %v454, %v453
    %v467 = vpack.c.b16 %v456, %v455
    %v468 = vpack.c.b16 %v458, %v457
    %v469 = vpack.c.b16 %v460, %v459
    %v470 = vpack.c.b16 %v462, %v461
    %479 = vmatprep.subr.bf16.mxu0 0
    %480 = vmatpush1.bf16.msra.mxu0 %v470
    %481 = vmatprep.subr.bf16.mxu0 0
    %482 = vmatpush1.bf16.msra.mxu0 %v469
    %483 = vmatprep.subr.bf16.mxu0 0
    %484 = vmatpush1.bf16.msra.mxu0 %v468
    %485 = vmatprep.subr.bf16.mxu0 0
    %486 = vmatpush1.bf16.msra.mxu0 %v467
    %487 = vmatprep.subr.bf16.mxu0 0
    %488 = vmatpush1.bf16.msra.mxu0 %v466
    %489 = vmatprep.subr.bf16.mxu0 0
    %490 = vmatpush1.bf16.msra.mxu0 %v465
    %491 = vmatprep.subr.bf16.mxu0 0
    %492 = vmatpush1.bf16.msra.mxu0 %v464
    %493 = vmatprep.subr.bf16.mxu0 0
    %494 = vmatpush1.bf16.msra.mxu0 %v463
    %495 = vmatprep.subr.bf16.mxu0 0
    %496 = vmatpush2.bf16.msra.mxu0 0
    %497 = vmatprep.subr.bf16.mxu0 0
    %498 = vmatpush2.bf16.msra.mxu0 0
    %499 = vmatprep.subr.bf16.mxu0 0
    %500 = vmatpush2.bf16.msra.mxu0 0
    %501 = vmatprep.subr.bf16.mxu0 0
    %502 = vmatpush2.bf16.msra.mxu0 0
    %503 = vmatprep.subr.bf16.mxu0 0
    %504 = vmatpush2.bf16.msra.mxu0 0
    %505 = vmatprep.subr.bf16.mxu0 0
    %506 = vmatpush2.bf16.msra.mxu0 0
    %507 = vmatprep.subr.bf16.mxu0 0
    %508 = vmatpush2.bf16.msra.mxu0 0
    %509 = vmatprep.subr.bf16.mxu0 0
    %510 = vmatpush2.bf16.msra.mxu0 0
    %511 = vmatprep.mubr.bf16.mxu0 0
    %512 = vmatmul.mubr.bf16.gmra.mxu0 %v407
    %v513 = vpop.f32.mrf.mxu0
    %v514 = vadd.f32 %v429, %v513
    %v515 = vpop.f32.mrf.mxu0
    %v516 = vpop.f32.mrf.mxu0
    %v517 = vpop.f32.mrf.mxu0
    %518 = vdwg.mxu0
    %v519 = vmax.f32 %v514, 0.0
    %v520 = vpack.c.bf16 %v519, %v519
    %v521 = vld [vmem:[%s5] sm:$0xf]
    %v522 = vld [vmem:[%s5 + $0x4] sm:$0xf]
    %v523 = vld [vmem:[%s5 + $0x8] sm:$0xf]
    %v524 = vld [vmem:[%s5 + $0xc] sm:$0xf]
    %v525 = vld [vmem:[%s5 + $0x10] sm:$0xf]
    %v526 = vld [vmem:[%s5 + $0x14] sm:$0xf]
    %v527 = vld [vmem:[%s5 + $0x18] sm:$0xf]
    %v528 = vld [vmem:[%s5 + $0x1c] sm:$0xf]
    %v529 = vld [vmem:[%s6] sm:$0x1]
    %v531 = vlaneseq
    %v532 = vshrl.u32 %v531, 7
    %v533 = vsub.s32 0, %v532
    %v534 = vrot.slane %v529, %v533
    %v544 = vunpack.c.l.b16 %v521
    %v545 = vunpack.c.l.b16 %v522
    %v546 = vunpack.c.l.b16 %v523
    %v547 = vunpack.c.l.b16 %v524
    %v548 = vunpack.c.l.b16 %v525
    %v549 = vunpack.c.l.b16 %v526
    %v550 = vunpack.c.l.b16 %v527
    %v551 = vunpack.c.l.b16 %v528
    %v552 = vpack.c.b16 %v545, %v544
    %v553 = vpack.c.b16 %v547, %v546
    %v554 = vpack.c.b16 %v549, %v548
    %v555 = vpack.c.b16 %v551, %v550
    %vm560 = vcmask 523264
    %v562 = vsel %vm560, %v520, 0
    %564 = vmatprep.subr.bf16.mxu0 0
    %565 = vmatpush1.bf16.msra.mxu0 0
    %566 = vmatprep.subr.bf16.mxu0 0
    %567 = vmatpush1.bf16.msra.mxu0 0
    %568 = vmatprep.subr.bf16.mxu0 0
    %569 = vmatpush1.bf16.msra.mxu0 0
    %570 = vmatprep.subr.bf16.mxu0 0
    %571 = vmatpush1.bf16.msra.mxu0 0
    %572 = vmatprep.subr.bf16.mxu0 0
    %573 = vmatpush1.bf16.msra.mxu0 %v555
    %574 = vmatprep.subr.bf16.mxu0 0
    %575 = vmatpush1.bf16.msra.mxu0 %v554
    %576 = vmatprep.subr.bf16.mxu0 0
    %577 = vmatpush1.bf16.msra.mxu0 %v553
    %578 = vmatprep.subr.bf16.mxu0 0
    %579 = vmatpush1.bf16.msra.mxu0 %v552
    %580 = vmatprep.subr.bf16.mxu0 0
    %581 = vmatpush2.bf16.msra.mxu0 0
    %582 = vmatprep.subr.bf16.mxu0 0
    %583 = vmatpush2.bf16.msra.mxu0 0
    %584 = vmatprep.subr.bf16.mxu0 0
    %585 = vmatpush2.bf16.msra.mxu0 0
    %586 = vmatprep.subr.bf16.mxu0 0
    %587 = vmatpush2.bf16.msra.mxu0 0
    %588 = vmatprep.subr.bf16.mxu0 0
    %589 = vmatpush2.bf16.msra.mxu0 0
    %590 = vmatprep.subr.bf16.mxu0 0
    %591 = vmatpush2.bf16.msra.mxu0 0
    %592 = vmatprep.subr.bf16.mxu0 0
    %593 = vmatpush2.bf16.msra.mxu0 0
    %594 = vmatprep.subr.bf16.mxu0 0
    %595 = vmatpush2.bf16.msra.mxu0 0
    %596 = vmatprep.mubr.bf16.mxu0 0
    %597 = vmatmul.mubr.bf16.gmra.mxu0 %v562
    %v598 = vpop.f32.mrf.mxu0
    %v599 = vadd.f32 %v534, %v598
    %v600 = vpop.f32.mrf.mxu0
    %v601 = vpop.f32.mrf.mxu0
    %v602 = vpop.f32.mrf.mxu0
    %603 = vdwg.mxu0
    %vm604 = vcmask 23552
    %605 = vst.msk [vmem:[#allocation2] sm:$0xff] %vm604, %v599
    // Predicated region
    $region30: #{simple_mlp_forward.1} parent=1 // pred_check
      _
    $region31: #{simple_mlp_forward.1} parent=1 // pred_check_branch
      %607 = sbr.rel (0) target = $region33
    $region32: #{simple_mlp_forward.1} parent=1 // pred_region
      %s609 = ssub.s32 128, 32
      %610 = vsyncadd [#allocation3], %s609
      %s611 = sshll.u32 [#allocation2], 4
      %s612 = int_to_ptr.vmem [resolvable:$true] %s611
      %617 = dma.vmem_to_hbm [thread:$0]  %s612, 32, %s7, [#allocation3], 32, 32, 2
    $region33: #{simple_mlp_forward.1} parent=1 // pred_fallthru
      _
    // Predicated region
    $region34: #{simple_mlp_forward.1} parent=1 // pred_check
      _
    $region35: #{simple_mlp_forward.1} parent=1 // pred_check_branch
      %619 = sbr.rel (0) target = $region37
    $region36: #{simple_mlp_forward.1} parent=1 // pred_region
      %620 = dma.done [#allocation3], 128
    $region37: #{simple_mlp_forward.1} parent=1 // pred_fallthru
      _
    %621 = vsyncpa [#allocation3], 1

</llo_original>
